<compile_context>
chip_gen: v6e
topology: v6e:2x2x1
jax: 0.10.0
libtpu: 0.0.40
codegen_flags: <defaults>
</compile_context>

<pallas_src>
import math
from functools import partial

import jax
import jax.numpy as jnp
from jax import lax
from jax.experimental import pallas as pl
from jax.experimental.pallas import tpu as pltpu

_VMEM_LIMIT = 64 * 1024 * 1024  # explicit scoped-VMEM ceiling (fits all gens)


# ---------------------------------------------------------------------------
# Kernel bodies
# ---------------------------------------------------------------------------

def _ln_proj_kernel(*refs, n_out, apply_ln, relu, eps):
    """(optional LayerNorm) -> n_out fused linear projections (+ optional ReLU).

    refs = (x, ln_alpha[SMEM], ln_beta[SMEM],
            w_0..w_{n-1}, bias_0..bias_{n-1}, out_0..out_{n-1})
      x block:    (tm, D)    f32
      w_i block:  (D, tn)    bf16
      bias_i:     (1, tn)    f32
      out_i:      (tm, tn)   bf16
    LN is recomputed per N-tile (cheap vs. the matmul; keeps weight residency
    bounded for large d_ff on v7x).
    """
    x_ref = refs[0]
    a_ref, b_ref = refs[1], refs[2]
    w_refs = refs[3:3 + n_out]
    bias_refs = refs[3 + n_out:3 + 2 * n_out]
    out_refs = refs[3 + 2 * n_out:]

    x = x_ref[...].astype(jnp.float32)                        # (tm, D)
    if apply_ln:
        n = x.shape[-1]
        mean = jnp.mean(x, axis=-1, keepdims=True)
        var = jnp.sum((x - mean) ** 2, axis=-1, keepdims=True) * (1.0 / (n - 1))
        inv = pl.reciprocal(jnp.sqrt(var) + eps, approx=True)  # EUP slot
        x = a_ref[0] * (x - mean) * inv + b_ref[0]

    xb = x.astype(jnp.bfloat16)                                # MXU operand dtype
    for w_ref, bias_ref, o_ref in zip(w_refs, bias_refs, out_refs):
        y = jnp.dot(xb, w_ref[...], preferred_element_type=jnp.float32)
        y = y + bias_ref[...]
        if relu:
            y = jnp.maximum(y, 0.0)
        o_ref[...] = y.astype(o_ref.dtype)


def _matmul_kernel(x_ref, w_ref, b_ref, o_ref, acc_ref):
    """Tiled matmul + bias: grid (M/tm, N/tn, K/tk), f32 VMEM accumulator.
    Inputs are already bf16, so there is no per-K-step cast."""
    @pl.when(pl.program_id(2) == 0)
    def _init():
        acc_ref[...] = jnp.zeros_like(acc_ref)

    acc_ref[...] += jnp.dot(x_ref[...], w_ref[...],
                            preferred_element_type=jnp.float32)

    @pl.when(pl.program_id(2) == pl.num_programs(2) - 1)
    def _finalize():
        o_ref[...] = (acc_ref[...] + b_ref[...]).astype(o_ref.dtype)


def _mha_kernel(q_ref, k_ref, v_ref, m_ref, o_ref, m_scr, l_scr, acc_scr,
                *, heads, scale):
    """Flash-style multi-head attention for one (batch, q-tile, kv-tile) step.

    grid = (B, Sq/tq, Sk/tkv) with the KV axis 'arbitrary'.  Per-(b, qi) the
    running max / sum / accumulator live in VMEM scratch; K/V only ever hold
    one (tkv, D) tile.  Heads are static d_k lane slices; the accumulator and
    output are updated/stored with single lane-dense (tq, D) writes.
    """
    kv = pl.program_id(2)

    @pl.when(kv == 0)
    def _init():
        m_scr[...] = jnp.full_like(m_scr, -jnp.inf)
        l_scr[...] = jnp.zeros_like(l_scr)
        acc_scr[...] = jnp.zeros_like(acc_scr)

    # int8 mask (1 = keep, 0 = masked); upcast before compare for robustness.
    masked = m_ref[0, 0].astype(jnp.float32) == 0.0            # (tq, tkv)

    d_model = q_ref.shape[-1]
    d_k = d_model // heads
    # Fold the softmax scale into q once (tq*D mults, not heads*tq*tkv).
    qs = (q_ref[0].astype(jnp.float32) * scale).astype(jnp.bfloat16)  # (tq, D)
    kb = k_ref[0]                                              # (tkv, D) bf16
    vb = v_ref[0]                                              # (tkv, D) bf16

    m_prev = m_scr[...]                                        # (tq, heads)
    l_prev = l_scr[...]                                        # (tq, heads)

    m_cols, l_cols, alpha_cols, pv_cols = [], [], [], []
    for h in range(heads):                                     # static unroll
        lo, hi = h * d_k, (h + 1) * d_k
        # q @ k^T without materializing a transpose of k.
        s = lax.dot_general(qs[:, lo:hi], kb[:, lo:hi],
                            (((1,), (1,)), ((), ())),
                            preferred_element_type=jnp.float32)  # (tq, tkv)
        s = jnp.where(masked, -1e9, s)
        m_old = m_prev[:, h:h + 1]                             # (tq, 1)
        m_new = jnp.maximum(m_old, jnp.max(s, axis=-1, keepdims=True))
        alpha = jnp.exp(m_old - m_new)                         # (tq, 1)
        p = jnp.exp(s - m_new)                                 # (tq, tkv)
        m_cols.append(m_new)
        l_cols.append(alpha * l_prev[:, h:h + 1]
                      + jnp.sum(p, axis=-1, keepdims=True))
        alpha_cols.append(jnp.broadcast_to(alpha, (alpha.shape[0], d_k)))
        pv_cols.append(jnp.dot(p.astype(jnp.bfloat16), vb[:, lo:hi],
                               preferred_element_type=jnp.float32))  # (tq, d_k)

    m_scr[...] = jnp.concatenate(m_cols, axis=-1)
    l_scr[...] = jnp.concatenate(l_cols, axis=-1)
    # Single lane-dense (tq, D) accumulator update.
    acc_scr[...] = (jnp.concatenate(alpha_cols, axis=-1) * acc_scr[...]
                    + jnp.concatenate(pv_cols, axis=-1))

    @pl.when(kv == pl.num_programs(2) - 1)
    def _finalize():
        inv_l = pl.reciprocal(l_scr[...], approx=True)         # (tq, heads), EUP
        inv_full = jnp.concatenate(
            [jnp.broadcast_to(inv_l[:, h:h + 1], (inv_l.shape[0], d_k))
             for h in range(heads)], axis=-1)                  # (tq, D)
        o_ref[0] = (acc_scr[...] * inv_full).astype(o_ref.dtype)   # lane-dense


# ---------------------------------------------------------------------------
# Wrappers
# ---------------------------------------------------------------------------

def _fit(dim, tile):
    """Use `tile` if it divides `dim`, else fall back to the full dimension
    (keeps the (8,128) block rule satisfied at small demo shapes).
    TODO(synk): cdiv grid + padded remainder for non-divisible prod shapes."""
    return tile if dim % tile == 0 else dim


def ln_proj(x3d, alpha, beta, weights, biases, *, apply_ln=True, relu=False,
            eps=1e-5, tm=256, tn=512, out_dtype=jnp.bfloat16):
    """Fused (LayerNorm ->) [x @ W_i + b_i for each i]; x is read once.
    All W_i must share the same output dim (true for every call here)."""
    B, S, D = x3d.shape
    M = B * S
    x2d = x3d.reshape(M, D)
    n_out = len(weights)
    out_dims = [int(w.shape[1]) for w in weights]
    N = out_dims[0]
    assert all(n == N for n in out_dims), "fused projections must share N"
    tm = _fit(M, tm)
    tn = _fit(N, tn)
    if alpha is None:
        alpha = jnp.ones((1,), jnp.float32)
    if beta is None:
        beta = jnp.zeros((1,), jnp.float32)

    in_specs = [
        pl.BlockSpec((tm, D), lambda i, j: (i, 0)),
        pl.BlockSpec(memory_space=pltpu.MemorySpace.SMEM),     # LN alpha (scalar)
        pl.BlockSpec(memory_space=pltpu.MemorySpace.SMEM),     # LN beta  (scalar)
    ]
    in_specs += [pl.BlockSpec((D, tn), lambda i, j: (0, j)) for _ in range(n_out)]
    in_specs += [pl.BlockSpec((1, tn), lambda i, j: (0, j)) for _ in range(n_out)]

    outs = pl.pallas_call(
        partial(_ln_proj_kernel, n_out=n_out, apply_ln=apply_ln,
                relu=relu, eps=eps),
        out_shape=tuple(jax.ShapeDtypeStruct((M, N), out_dtype)
                        for _ in range(n_out)),
        grid_spec=pltpu.PrefetchScalarGridSpec(
            num_scalar_prefetch=0,
            grid=(M // tm, N // tn),
            in_specs=in_specs,
            out_specs=tuple(pl.BlockSpec((tm, tn), lambda i, j: (i, j))
                            for _ in range(n_out)),
        ),
        compiler_params=pltpu.CompilerParams(
            dimension_semantics=("parallel", "parallel"),
            vmem_limit_bytes=_VMEM_LIMIT),
    )(x2d, alpha, beta, *weights, *[b.reshape(1, -1) for b in biases])
    return tuple(o.reshape(B, S, N) for o in outs)


def linear(x2d, w, b, *, tm=512, tn=512, tk=1024):
    """Tiled bf16 matmul + f32 bias with K-axis accumulation.
    Defaults sized for v6e roofline; v7x/v5e shapes fall back via _fit."""
    x2d = x2d.astype(jnp.bfloat16)
    M, K = x2d.shape
    N = w.shape[1]
    tm, tn, tk = _fit(M, tm), _fit(N, tn), _fit(K, tk)
    return pl.pallas_call(
        _matmul_kernel,
        out_shape=jax.ShapeDtypeStruct((M, N), jnp.float32),
        grid_spec=pltpu.PrefetchScalarGridSpec(
            num_scalar_prefetch=0,
            grid=(M // tm, N // tn, K // tk),
            in_specs=[
                pl.BlockSpec((tm, tk), lambda i, j, k: (i, k)),
                pl.BlockSpec((tk, tn), lambda i, j, k: (k, j)),
                pl.BlockSpec((1, tn), lambda i, j, k: (0, j)),
            ],
            out_specs=pl.BlockSpec((tm, tn), lambda i, j, k: (i, j)),
            scratch_shapes=[pltpu.VMEM((tm, tn), jnp.float32)],
        ),
        compiler_params=pltpu.CompilerParams(
            dimension_semantics=("parallel", "parallel", "arbitrary"),
            vmem_limit_bytes=_VMEM_LIMIT),
    )(x2d, w, b.reshape(1, N))


def mha(q, k, v, mask_i8, heads, *, tq=256, tkv=512):
    """q: (B,Sq,D) bf16, k/v: (B,Sk,D) bf16, mask_i8: (B,1,Sq,Sk) int8
    (1 = keep, 0 = masked) -> (B,Sq,D) bf16.  Flash-style KV tiling."""
    B, Sq, D = q.shape
    Sk = k.shape[1]
    tq = _fit(Sq, tq)
    tkv = _fit(Sk, tkv)
    scale = 1.0 / math.sqrt(D // heads)
    return pl.pallas_call(
        partial(_mha_kernel, heads=heads, scale=scale),
        out_shape=jax.ShapeDtypeStruct((B, Sq, D), jnp.bfloat16),
        grid_spec=pltpu.PrefetchScalarGridSpec(
            num_scalar_prefetch=0,
            grid=(B, Sq // tq, Sk // tkv),
            in_specs=[
                pl.BlockSpec((1, tq, D), lambda b, qi, kv: (b, qi, 0)),
                pl.BlockSpec((1, tkv, D), lambda b, qi, kv: (b, kv, 0)),
                pl.BlockSpec((1, tkv, D), lambda b, qi, kv: (b, kv, 0)),
                pl.BlockSpec((1, 1, tq, tkv), lambda b, qi, kv: (b, 0, qi, kv)),
            ],
            out_specs=pl.BlockSpec((1, tq, D), lambda b, qi, kv: (b, qi, 0)),
            scratch_shapes=[
                pltpu.VMEM((tq, heads), jnp.float32),   # running max  per head
                pltpu.VMEM((tq, heads), jnp.float32),   # running sum  per head
                pltpu.VMEM((tq, D), jnp.float32),       # output accumulator
            ],
        ),
        compiler_params=pltpu.CompilerParams(
            dimension_semantics=("parallel", "parallel", "arbitrary"),
            vmem_limit_bytes=_VMEM_LIMIT),
    )(q, k, v, mask_i8)


def decoder_block(x, encoder_output, source_mask, target_mask, params, heads):
    """ResidualConnection = dropout(subLayer(norm(x))) -- no residual add,
    dropout is identity (eval mode), exactly as in the PyTorch reference."""
    B, Sq, D = x.shape
    ps, pc = params["self_attn"], params["cross_attn"]

    # int8 masks (1 = keep, 0 = masked): 4x less HBM/VMEM than f32.
    tmask_i8 = (target_mask != 0).astype(jnp.int8)
    smask_i8 = (source_mask != 0).astype(jnp.int8)

    # --- sublayer 0: LN -> self-attention (fused LN + Q/K/V projections) ----
    q, k, v = ln_proj(x, params["ln0_a"], params["ln0_b"],
                      [ps["wq"], ps["wk"], ps["wv"]],
                      [ps["bq"], ps["bk"], ps["bv"]])
    attn = mha(q, k, v, tmask_i8, heads)
    x = linear(attn.reshape(B * Sq, D), ps["wo"], ps["bo"]).reshape(B, Sq, D)

    # --- sublayer 1: LN -> cross-attention ----------------------------------
    (q,) = ln_proj(x, params["ln1_a"], params["ln1_b"],
                   [pc["wq"]], [pc["bq"]])
    k, v = ln_proj(encoder_output, None, None,
                   [pc["wk"], pc["wv"]], [pc["bk"], pc["bv"]],
                   apply_ln=False)                 # encoder output is NOT normalized
    attn = mha(q, k, v, smask_i8, heads)
    x = linear(attn.reshape(B * Sq, D), pc["wo"], pc["bo"]).reshape(B, Sq, D)

    # --- sublayer 2: LN -> FFN (LN + linear_1 + ReLU fused; linear2 K-tiled) -
    (h,) = ln_proj(x, params["ln2_a"], params["ln2_b"],
                   [params["ffn_w1"]], [params["ffn_b1"]], relu=True)
    d_ff = params["ffn_w1"].shape[1]
    x = linear(h.reshape(B * Sq, d_ff), params["ffn_w2"],
               params["ffn_b2"]).reshape(B, Sq, D)
    return x


# ---------------------------------------------------------------------------
# Deterministic parameter init (PyTorch nn.Linear-style uniform)
# ---------------------------------------------------------------------------

def _init_linear(key, d_in, d_out):
    kw, kb = jax.random.split(key)
    bound = 1.0 / math.sqrt(d_in)
    w = jax.random.uniform(kw, (d_in, d_out), jnp.float32, -bound, bound)
    b = jax.random.uniform(kb, (d_out,), jnp.float32, -bound, bound)
    return w.astype(jnp.bfloat16), b          # weights stored bf16, bias f32


def _init_attn(key, d_model):
    ks = jax.random.split(key, 4)
    wq, bq = _init_linear(ks[0], d_model, d_model)
    wk, bk = _init_linear(ks[1], d_model, d_model)
    wv, bv = _init_linear(ks[2], d_model, d_model)
    wo, bo = _init_linear(ks[3], d_model, d_model)
    return dict(wq=wq, bq=bq, wk=wk, bk=bk, wv=wv, bv=bv, wo=wo, bo=bo)


def init_params(key, d_model, d_ff):
    ks = jax.random.split(key, 4)
    w1, b1 = _init_linear(ks[2], d_model, d_ff)
    w2, b2 = _init_linear(ks[3], d_ff, d_model)
    one = jnp.ones((1,), jnp.float32)
    zero = jnp.zeros((1,), jnp.float32)
    return dict(
        self_attn=_init_attn(ks[0], d_model),
        cross_attn=_init_attn(ks[1], d_model),
        ffn_w1=w1, ffn_b1=b1, ffn_w2=w2, ffn_b2=b2,
        ln0_a=one, ln0_b=zero, ln1_a=one, ln1_b=zero, ln2_a=one, ln2_b=zero,
    )


# ---------------------------------------------------------------------------
# Pure-JAX reference (same bf16-operand / f32-accumulate recipe) for sanity
# ---------------------------------------------------------------------------

def _bf16_dot(a, b):
    return jnp.dot(a.astype(jnp.bfloat16), b.astype(jnp.bfloat16),
                   preferred_element_type=jnp.float32)


def _ref_ln(x, alpha, beta, eps=1e-5):
    mean = x.mean(-1, keepdims=True)
    var = ((x - mean) ** 2).sum(-1, keepdims=True) / (x.shape[-1] - 1)
    return alpha * (x - mean) / (jnp.sqrt(var) + eps) + beta


def _ref_attn(q_in, k_in, v_in, mask, p, heads):
    B, Sq, D = q_in.shape
    d_k = D // heads

    def proj(t, w, b):
        S = t.shape[1]
        y = _bf16_dot(t.reshape(-1, D), w) + b
        return y.reshape(B, S, heads, d_k).transpose(0, 2, 1, 3)

    q = proj(q_in, p["wq"], p["bq"])
    k = proj(k_in, p["wk"], p["bk"])
    v = proj(v_in, p["wv"], p["bv"])
    s = jnp.einsum("bhqd,bhkd->bhqk", q.astype(jnp.bfloat16),
                   k.astype(jnp.bfloat16),
                   preferred_element_type=jnp.float32) * (1.0 / math.sqrt(d_k))
    s = jnp.where(mask == 0, -1e9, s)
    w = jax.nn.softmax(s, axis=-1)
    o = jnp.einsum("bhqk,bhkd->bhqd", w.astype(jnp.bfloat16),
                   v.astype(jnp.bfloat16),
                   preferred_element_type=jnp.float32)
    o = o.transpose(0, 2, 1, 3).reshape(B, Sq, D)
    return (_bf16_dot(o.reshape(-1, D), p["wo"]) + p["bo"]).reshape(B, Sq, D)


def _ref_decoder(x, enc, smask, tmask, p, heads):
    nx = _ref_ln(x, p["ln0_a"], p["ln0_b"])
    x = _ref_attn(nx, nx, nx, tmask, p["self_attn"], heads)
    nx = _ref_ln(x, p["ln1_a"], p["ln1_b"])
    x = _ref_attn(nx, enc, enc, smask, p["cross_attn"], heads)
    nx = _ref_ln(x, p["ln2_a"], p["ln2_b"])
    B, S, D = nx.shape
    h = jnp.maximum(_bf16_dot(nx.reshape(-1, D), p["ffn_w1"]) + p["ffn_b1"], 0.0)
    return (_bf16_dot(h, p["ffn_w2"]) + p["ffn_b2"]).reshape(B, S, D)


# ---------------------------------------------------------------------------

if __name__ == "__main__":
    B, S_tgt, S_src = 2, 8, 8
    d_model, heads, d_ff = 32, 4, 64

    key = jax.random.PRNGKey(0)
    k_x, k_enc, k_p = jax.random.split(key, 3)

    x = jax.random.normal(k_x, (B, S_tgt, d_model), jnp.float32)
    encoder_output = jax.random.normal(k_enc, (B, S_src, d_model), jnp.float32)
    # causal target mask, full source mask (0/1 floats, broadcast like PyTorch)
    target_mask = jnp.tril(jnp.ones((S_tgt, S_tgt), jnp.float32))[None, None]
    target_mask = jnp.broadcast_to(target_mask, (B, 1, S_tgt, S_tgt))
    source_mask = jnp.ones((B, 1, S_tgt, S_src), jnp.float32)

    params = init_params(k_p, d_model, d_ff)

    out = decoder_block(x, encoder_output, source_mask, target_mask,
                        params, heads)
    out = jax.block_until_ready(out)

    ref = _ref_decoder(x, encoder_output, source_mask, target_mask,
                       params, heads)
    assert out.shape == (B, S_tgt, d_model)
    assert jnp.allclose(out, ref, rtol=2e-2, atol=2e-2), "mismatch vs reference"

    print("KERNEL_OK")
</pallas_src>

<mosaic_0001>
module attributes {stable_mosaic.version = 11 : i64} {
  func.func @_ln_proj_kernel(%arg0: i32, %arg1: i32, %arg2: memref<16x32xf32, #tpu.memory_space<vmem>>, %arg3: memref<1xf32, #tpu.memory_space<smem>>, %arg4: memref<1xf32, #tpu.memory_space<smem>>, %arg5: memref<32x32xbf16, #tpu.memory_space<vmem>>, %arg6: memref<32x32xbf16, #tpu.memory_space<vmem>>, %arg7: memref<32x32xbf16, #tpu.memory_space<vmem>>, %arg8: memref<1x32xf32, #tpu.memory_space<vmem>>, %arg9: memref<1x32xf32, #tpu.memory_space<vmem>>, %arg10: memref<1x32xf32, #tpu.memory_space<vmem>>, %arg11: memref<16x32xbf16, #tpu.memory_space<vmem>>, %arg12: memref<16x32xbf16, #tpu.memory_space<vmem>>, %arg13: memref<16x32xbf16, #tpu.memory_space<vmem>>) attributes {dimension_semantics = [#tpu.dimension_semantics<parallel>, #tpu.dimension_semantics<parallel>], iteration_bounds = array<i64: 1, 1>, scalar_prefetch = 0 : i64, scratch_operands = 0 : i64, tpu.core_type = #tpu.core_type<tc>, window_params = [{transform_indices = @transform_0, window_bounds = array<i64: 16, 32>}, {transform_indices = @transform_1, window_bounds = array<i64: 1>}, {transform_indices = @transform_2, window_bounds = array<i64: 1>}, {transform_indices = @transform_3, window_bounds = array<i64: 32, 32>}, {transform_indices = @transform_4, window_bounds = array<i64: 32, 32>}, {transform_indices = @transform_5, window_bounds = array<i64: 32, 32>}, {transform_indices = @transform_6, window_bounds = array<i64: 1, 32>}, {transform_indices = @transform_7, window_bounds = array<i64: 1, 32>}, {transform_indices = @transform_8, window_bounds = array<i64: 1, 32>}, {transform_indices = @transform_9, window_bounds = array<i64: 16, 32>}, {transform_indices = @transform_10, window_bounds = array<i64: 16, 32>}, {transform_indices = @transform_11, window_bounds = array<i64: 16, 32>}]} {
    %c0 = arith.constant 0 : index
    %c0_0 = arith.constant 0 : index
    %0 = vector.load %arg2[%c0, %c0_0] : memref<16x32xf32, #tpu.memory_space<vmem>>, vector<16x32xf32>
    %cst = arith.constant dense<0.000000e+00> : vector<16xf32>
    %1 = vector.multi_reduction <add>, %0, %cst [1] : vector<16x32xf32> to vector<16xf32>
    %2 = vector.shape_cast %1 : vector<16xf32> to vector<16x1xf32>
    %cst_1 = arith.constant 3.200000e+01 : f32
    %3 = vector.broadcast %cst_1 : f32 to vector<16x1xf32>
    %4 = arith.divf %2, %3 : vector<16x1xf32>
    %5 = vector.broadcast %4 : vector<16x1xf32> to vector<16x32xf32>
    %6 = arith.subf %0, %5 : vector<16x32xf32>
    %7 = arith.mulf %6, %6 : vector<16x32xf32>
    %cst_2 = arith.constant dense<0.000000e+00> : vector<16xf32>
    %8 = vector.multi_reduction <add>, %7, %cst_2 [1] : vector<16x32xf32> to vector<16xf32>
    %9 = vector.shape_cast %8 : vector<16xf32> to vector<16x1xf32>
    %cst_3 = arith.constant 0.0322580636 : f32
    %10 = vector.broadcast %cst_3 : f32 to vector<16x1xf32>
    %11 = arith.mulf %9, %10 : vector<16x1xf32>
    %12 = math.sqrt %11 : vector<16x1xf32>
    %cst_4 = arith.constant 9.99999974E-6 : f32
    %13 = vector.broadcast %cst_4 : f32 to vector<16x1xf32>
    %14 = arith.addf %12, %13 : vector<16x1xf32>
    %15 = tpu.reciprocal %14 {approx = true} : vector<16x1xf32> -> vector<16x1xf32>
    %c0_5 = arith.constant 0 : index
    %16 = memref.load %arg3[%c0_5] : memref<1xf32, #tpu.memory_space<smem>>
    %17 = vector.broadcast %4 : vector<16x1xf32> to vector<16x32xf32>
    %18 = arith.subf %0, %17 : vector<16x32xf32>
    %19 = vector.broadcast %16 : f32 to vector<16x32xf32>
    %20 = arith.mulf %19, %18 : vector<16x32xf32>
    %21 = vector.broadcast %15 : vector<16x1xf32> to vector<16x32xf32>
    %22 = arith.mulf %20, %21 : vector<16x32xf32>
    %c0_6 = arith.constant 0 : index
    %23 = memref.load %arg4[%c0_6] : memref<1xf32, #tpu.memory_space<smem>>
    %24 = vector.broadcast %23 : f32 to vector<16x32xf32>
    %25 = arith.addf %22, %24 : vector<16x32xf32>
    %26 = arith.truncf %25 : vector<16x32xf32> to vector<16x32xbf16>
    %c0_7 = arith.constant 0 : index
    %c0_8 = arith.constant 0 : index
    %27 = vector.load %arg5[%c0_7, %c0_8] : memref<32x32xbf16, #tpu.memory_space<vmem>>, vector<32x32xbf16>
    %cst_9 = arith.constant dense<0.000000e+00> : vector<16x32xf32>
    %28 = tpu.matmul %26, %27, %cst_9 {dimension_numbers = #tpu.dot_dimension_numbers<[1], [0], [0], [1], [0, 0, 1, 1], [], []>} : vector<16x32xbf16>, vector<32x32xbf16>, vector<16x32xf32> -> vector<16x32xf32>
    %c0_10 = arith.constant 0 : index
    %c0_11 = arith.constant 0 : index
    %29 = vector.load %arg8[%c0_10, %c0_11] : memref<1x32xf32, #tpu.memory_space<vmem>>, vector<1x32xf32>
    %30 = vector.broadcast %29 : vector<1x32xf32> to vector<16x32xf32>
    %31 = arith.addf %28, %30 : vector<16x32xf32>
    %32 = arith.truncf %31 : vector<16x32xf32> to vector<16x32xbf16>
    %c0_12 = arith.constant 0 : index
    %c0_13 = arith.constant 0 : index
    %33 = vector.load %arg11[%c0_12, %c0_13] : memref<16x32xbf16, #tpu.memory_space<vmem>>, vector<16x32xbf16>
    tpu.vector_store %arg11[%c0_12, %c0_13], %32 {strides = array<i32>} : memref<16x32xbf16, #tpu.memory_space<vmem>>, vector<16x32xbf16>,
    %c0_14 = arith.constant 0 : index
    %c0_15 = arith.constant 0 : index
    %34 = vector.load %arg6[%c0_14, %c0_15] : memref<32x32xbf16, #tpu.memory_space<vmem>>, vector<32x32xbf16>
    %cst_16 = arith.constant dense<0.000000e+00> : vector<16x32xf32>
    %35 = tpu.matmul %26, %34, %cst_16 {dimension_numbers = #tpu.dot_dimension_numbers<[1], [0], [0], [1], [0, 0, 1, 1], [], []>} : vector<16x32xbf16>, vector<32x32xbf16>, vector<16x32xf32> -> vector<16x32xf32>
    %c0_17 = arith.constant 0 : index
    %c0_18 = arith.constant 0 : index
    %36 = vector.load %arg9[%c0_17, %c0_18] : memref<1x32xf32, #tpu.memory_space<vmem>>, vector<1x32xf32>
    %37 = vector.broadcast %36 : vector<1x32xf32> to vector<16x32xf32>
    %38 = arith.addf %35, %37 : vector<16x32xf32>
    %39 = arith.truncf %38 : vector<16x32xf32> to vector<16x32xbf16>
    %c0_19 = arith.constant 0 : index
    %c0_20 = arith.constant 0 : index
    %40 = vector.load %arg12[%c0_19, %c0_20] : memref<16x32xbf16, #tpu.memory_space<vmem>>, vector<16x32xbf16>
    tpu.vector_store %arg12[%c0_19, %c0_20], %39 {strides = array<i32>} : memref<16x32xbf16, #tpu.memory_space<vmem>>, vector<16x32xbf16>,
    %c0_21 = arith.constant 0 : index
    %c0_22 = arith.constant 0 : index
    %41 = vector.load %arg7[%c0_21, %c0_22] : memref<32x32xbf16, #tpu.memory_space<vmem>>, vector<32x32xbf16>
    %cst_23 = arith.constant dense<0.000000e+00> : vector<16x32xf32>
    %42 = tpu.matmul %26, %41, %cst_23 {dimension_numbers = #tpu.dot_dimension_numbers<[1], [0], [0], [1], [0, 0, 1, 1], [], []>} : vector<16x32xbf16>, vector<32x32xbf16>, vector<16x32xf32> -> vector<16x32xf32>
    %c0_24 = arith.constant 0 : index
    %c0_25 = arith.constant 0 : index
    %43 = vector.load %arg10[%c0_24, %c0_25] : memref<1x32xf32, #tpu.memory_space<vmem>>, vector<1x32xf32>
    %44 = vector.broadcast %43 : vector<1x32xf32> to vector<16x32xf32>
    %45 = arith.addf %42, %44 : vector<16x32xf32>
    %46 = arith.truncf %45 : vector<16x32xf32> to vector<16x32xbf16>
    %c0_26 = arith.constant 0 : index
    %c0_27 = arith.constant 0 : index
    %47 = vector.load %arg13[%c0_26, %c0_27] : memref<16x32xbf16, #tpu.memory_space<vmem>>, vector<16x32xbf16>
    tpu.vector_store %arg13[%c0_26, %c0_27], %46 {strides = array<i32>} : memref<16x32xbf16, #tpu.memory_space<vmem>>, vector<16x32xbf16>,
    return
  }
  func.func @transform_0(%arg0: i32, %arg1: i32) -> (i32, i32) {
    %c0_i32 = arith.constant 0 : i32
    %c0_i32_0 = arith.constant 0 : i32
    return %arg0, %c0_i32 : i32, i32
  }
  func.func @transform_1(%arg0: i32, %arg1: i32) -> i32 {
    %c0_i32 = arith.constant 0 : i32
    %c0_i32_0 = arith.constant 0 : i32
    return %c0_i32 : i32
  }
  func.func @transform_2(%arg0: i32, %arg1: i32) -> i32 {
    %c0_i32 = arith.constant 0 : i32
    %c0_i32_0 = arith.constant 0 : i32
    return %c0_i32 : i32
  }
  func.func @transform_3(%arg0: i32, %arg1: i32) -> (i32, i32) {
    %c0_i32 = arith.constant 0 : i32
    %c0_i32_0 = arith.constant 0 : i32
    return %c0_i32, %arg1 : i32, i32
  }
  func.func @transform_4(%arg0: i32, %arg1: i32) -> (i32, i32) {
    %c0_i32 = arith.constant 0 : i32
    %c0_i32_0 = arith.constant 0 : i32
    return %c0_i32, %arg1 : i32, i32
  }
  func.func @transform_5(%arg0: i32, %arg1: i32) -> (i32, i32) {
    %c0_i32 = arith.constant 0 : i32
    %c0_i32_0 = arith.constant 0 : i32
    return %c0_i32, %arg1 : i32, i32
  }
  func.func @transform_6(%arg0: i32, %arg1: i32) -> (i32, i32) {
    %c0_i32 = arith.constant 0 : i32
    %c0_i32_0 = arith.constant 0 : i32
    return %c0_i32, %arg1 : i32, i32
  }
  func.func @transform_7(%arg0: i32, %arg1: i32) -> (i32, i32) {
    %c0_i32 = arith.constant 0 : i32
    %c0_i32_0 = arith.constant 0 : i32
    return %c0_i32, %arg1 : i32, i32
  }
  func.func @transform_8(%arg0: i32, %arg1: i32) -> (i32, i32) {
    %c0_i32 = arith.constant 0 : i32
    %c0_i32_0 = arith.constant 0 : i32
    return %c0_i32, %arg1 : i32, i32
  }
  func.func @transform_9(%arg0: i32, %arg1: i32) -> (i32, i32) {
    %c0_i32 = arith.constant 0 : i32
    return %arg0, %arg1 : i32, i32
  }
  func.func @transform_10(%arg0: i32, %arg1: i32) -> (i32, i32) {
    %c0_i32 = arith.constant 0 : i32
    return %arg0, %arg1 : i32, i32
  }
  func.func @transform_11(%arg0: i32, %arg1: i32) -> (i32, i32) {
    %c0_i32 = arith.constant 0 : i32
    return %arg0, %arg1 : i32, i32
  }
}

</mosaic_0001>

<llo_original>
// kernel: tpu_custom_call.1
$region0: #{tpu_custom_call.1}
  #allocation0 [shape = 'u32[]', space=smem, size = 0x4, offset = 0x4, fixed_abs, tag = 'smem constant byte address 0x4 - core index']
  #allocation1 [shape = 'u32[144,128]{1,0:T(1,128)}', space=vmem, size = 0x12000, scoped, tag = 'internal scratch']
  #allocation2 [shape = 'f32[1]{0:T(128)S(6)}', space=smem, size = 0x200, scoped, tag = 'scoped memory for tpu_custom_call.1']
  #allocation3 [shape = 'f32[1]{0:T(128)S(6)}', space=smem, size = 0x200, scoped, tag = 'scoped memory for tpu_custom_call.1']
  %s0 = inlined_call_operand.hbm [shape: f32[16,32], index: 0, kind: input, shape index: {}]
  %s1 = inlined_call_operand.<no memory space> [shape: f32[1], index: 1, kind: input, shape index: {}]
  %s2 = inlined_call_operand.<no memory space> [shape: f32[1], index: 2, kind: input, shape index: {}]
  %s3 = inlined_call_operand.hbm [shape: bf16[32,32], index: 3, kind: input, shape index: {}]
  %s4 = inlined_call_operand.hbm [shape: bf16[32,32], index: 4, kind: input, shape index: {}]
  %s5 = inlined_call_operand.hbm [shape: bf16[32,32], index: 5, kind: input, shape index: {}]
  %s6 = inlined_call_operand.vmem [shape: f32[1,32], index: 6, kind: input, shape index: {}]
  %s7 = inlined_call_operand.vmem [shape: f32[1,32], index: 7, kind: input, shape index: {}]
  %s8 = inlined_call_operand.vmem [shape: f32[1,32], index: 8, kind: input, shape index: {}]
  %s9 = inlined_call_operand.hbm [shape: bf16[16,32], index: 9, kind: output, shape index: {0}]
  %s10 = inlined_call_operand.hbm [shape: bf16[16,32], index: 10, kind: output, shape index: {1}]
  %s11 = inlined_call_operand.hbm [shape: bf16[16,32], index: 11, kind: output, shape index: {2}]
  %12 = xla_tuple %s9, %s10, %s11
  %s13 = sld [smem:[#allocation0]]
  $region78: #{tpu_custom_call.1} parent=0
    _
  %s15 = ssub.s32 1, %s13
  %s16 = scalar_select 0, %s15, %s13
  %17 = sst [smem:[#allocation2]] %s1
  %18 = sst [smem:[#allocation3]] %s2
  $region1: #{tpu_custom_call.1} parent=0
    #allocation4 [shape = 'u8[8192]{0}', space=vmem, size = 0x2000, scoped, tag = 'input window, operand 0, single buffered']
    #allocation5 [shape = 's32[1]{0}', space=sflag, size = 0x4, scoped, tag = 'scoped memory for tpu_custom_call.1']
    #allocation6 [shape = 's32[1]{0}', space=sflag, size = 0x4, scoped, tag = 'scoped memory for tpu_custom_call.1']
    #allocation7 [shape = 'u8[8192]{0}', space=vmem, size = 0x2000, scoped, tag = 'input window, operand 3, single buffered']
    #allocation8 [shape = 's32[1]{0}', space=sflag, size = 0x4, scoped, tag = 'scoped memory for tpu_custom_call.1']
    #allocation9 [shape = 'u8[8192]{0}', space=vmem, size = 0x2000, scoped, tag = 'input window, operand 4, single buffered']
    #allocation10 [shape = 'u8[8192]{0}', space=vmem, size = 0x2000, scoped, tag = 'input window, operand 5, single buffered']
    #allocation11 [shape = 's32[1]{0}', space=sflag, size = 0x4, scoped, tag = 'scoped memory for tpu_custom_call.1']
    #allocation12 [shape = 'u8[4096]{0}', space=vmem, size = 0x1000, scoped, tag = 'output window, operand 0, single buffered']
    #allocation13 [shape = 'u8[4096]{0}', space=vmem, size = 0x1000, scoped, tag = 'output window, operand 1, single buffered']
    #allocation14 [shape = 's32[1]{0}', space=sflag, size = 0x4, scoped, tag = 'scoped memory for tpu_custom_call.1']
    #allocation15 [shape = 'u8[4096]{0}', space=vmem, size = 0x1000, scoped, tag = 'output window, operand 2, single buffered']
    %19 = vsyncpa [#allocation5], 0
    %20 = vsyncpa [#allocation8], 0
    %21 = vsyncpa [#allocation11], 0
    %22 = vsyncpa [#allocation6], 0
    %23 = vsyncpa [#allocation14], 0
    // Predicated region
    $region2: #{tpu_custom_call.1} parent=1 // pred_check
      _
    $region3: #{tpu_custom_call.1} parent=1 // pred_check_branch
      %25 = sbr.rel (0) target = $region5
    $region4: #{tpu_custom_call.1} parent=1 // pred_region
      %s27 = ssub.s32 256, 256
      %28 = vsyncadd [#allocation5], %s27
      %s29 = sshll.u32 [#allocation4], 4
      %s30 = int_to_ptr.vmem [resolvable:$true] %s29
      %35 = dma.hbm_to_vmem [thread:$0]  %s0, 256, %s30, [#allocation5], 128, 128, 8
    $region5: #{tpu_custom_call.1} parent=1 // pred_fallthru
      _
    // Predicated region
    $region6: #{tpu_custom_call.1} parent=1 // pred_check
      _
    $region7: #{tpu_custom_call.1} parent=1 // pred_check_branch
      %37 = sbr.rel (0) target = $region9
    $region8: #{tpu_custom_call.1} parent=1 // pred_region
      _
    $region9: #{tpu_custom_call.1} parent=1 // pred_fallthru
      _
    // Predicated region
    $region10: #{tpu_custom_call.1} parent=1 // pred_check
      _
    $region11: #{tpu_custom_call.1} parent=1 // pred_check_branch
      %39 = sbr.rel (0) target = $region13
    $region12: #{tpu_custom_call.1} parent=1 // pred_region
      _
    $region13: #{tpu_custom_call.1} parent=1 // pred_fallthru
      _
    // Predicated region
    $region14: #{tpu_custom_call.1} parent=1 // pred_check
      _
    $region15: #{tpu_custom_call.1} parent=1 // pred_check_branch
      %41 = sbr.rel (0) target = $region17
    $region16: #{tpu_custom_call.1} parent=1 // pred_region
      %s43 = ssub.s32 256, 256
      %44 = vsyncadd [#allocation8], %s43
      %s45 = sshll.u32 [#allocation7], 4
      %s46 = int_to_ptr.vmem [resolvable:$true] %s45
      %51 = dma.hbm_to_vmem [thread:$0]  %s3, 256, %s46, [#allocation8], 64, 64, 4
    $region17: #{tpu_custom_call.1} parent=1 // pred_fallthru
      _
    // Predicated region
    $region18: #{tpu_custom_call.1} parent=1 // pred_check
      _
    $region19: #{tpu_custom_call.1} parent=1 // pred_check_branch
      %53 = sbr.rel (0) target = $region21
    $region20: #{tpu_custom_call.1} parent=1 // pred_region
      %s55 = ssub.s32 256, 256
      %56 = vsyncadd [#allocation8], %s55
      %s57 = sshll.u32 [#allocation9], 4
      %s58 = int_to_ptr.vmem [resolvable:$true] %s57
      %63 = dma.hbm_to_vmem [thread:$0]  %s4, 256, %s58, [#allocation8], 64, 64, 4
    $region21: #{tpu_custom_call.1} parent=1 // pred_fallthru
      _
    // Predicated region
    $region22: #{tpu_custom_call.1} parent=1 // pred_check
      _
    $region23: #{tpu_custom_call.1} parent=1 // pred_check_branch
      %65 = sbr.rel (0) target = $region25
    $region24: #{tpu_custom_call.1} parent=1 // pred_region
      %s67 = ssub.s32 256, 256
      %68 = vsyncadd [#allocation11], %s67
      %s69 = sshll.u32 [#allocation10], 4
      %s70 = int_to_ptr.vmem [resolvable:$true] %s69
      %75 = dma.hbm_to_vmem [thread:$0]  %s5, 256, %s70, [#allocation11], 64, 64, 4
    $region25: #{tpu_custom_call.1} parent=1 // pred_fallthru
      _
    // Predicated region
    $region26: #{tpu_custom_call.1} parent=1 // pred_check
      _
    $region27: #{tpu_custom_call.1} parent=1 // pred_check_branch
      %77 = sbr.rel (0) target = $region29
    $region28: #{tpu_custom_call.1} parent=1 // pred_region
      _
    $region29: #{tpu_custom_call.1} parent=1 // pred_fallthru
      _
    // Predicated region
    $region30: #{tpu_custom_call.1} parent=1 // pred_check
      _
    $region31: #{tpu_custom_call.1} parent=1 // pred_check_branch
      %79 = sbr.rel (0) target = $region33
    $region32: #{tpu_custom_call.1} parent=1 // pred_region
      _
    $region33: #{tpu_custom_call.1} parent=1 // pred_fallthru
      _
    // Predicated region
    $region34: #{tpu_custom_call.1} parent=1 // pred_check
      _
    $region35: #{tpu_custom_call.1} parent=1 // pred_check_branch
      %81 = sbr.rel (0) target = $region37
    $region36: #{tpu_custom_call.1} parent=1 // pred_region
      _
    $region37: #{tpu_custom_call.1} parent=1 // pred_fallthru
      _
    // Predicated region
    $region38: #{tpu_custom_call.1} parent=1 // pred_check
      _
    $region39: #{tpu_custom_call.1} parent=1 // pred_check_branch
      %83 = sbr.rel (0) target = $region41
    $region40: #{tpu_custom_call.1} parent=1 // pred_region
      %84 = dma.done [#allocation5], 256
    $region41: #{tpu_custom_call.1} parent=1 // pred_fallthru
      _
    // Predicated region
    $region42: #{tpu_custom_call.1} parent=1 // pred_check
      _
    $region43: #{tpu_custom_call.1} parent=1 // pred_check_branch
      %86 = sbr.rel (0) target = $region45
    $region44: #{tpu_custom_call.1} parent=1 // pred_region
      %87 = dma.done [#allocation8], 256
    $region45: #{tpu_custom_call.1} parent=1 // pred_fallthru
      _
    // Predicated region
    $region46: #{tpu_custom_call.1} parent=1 // pred_check
      _
    $region47: #{tpu_custom_call.1} parent=1 // pred_check_branch
      %89 = sbr.rel (0) target = $region49
    $region48: #{tpu_custom_call.1} parent=1 // pred_region
      %90 = dma.done [#allocation8], 256
    $region49: #{tpu_custom_call.1} parent=1 // pred_fallthru
      _
    // Predicated region
    $region50: #{tpu_custom_call.1} parent=1 // pred_check
      _
    $region51: #{tpu_custom_call.1} parent=1 // pred_check_branch
      %92 = sbr.rel (0) target = $region53
    $region52: #{tpu_custom_call.1} parent=1 // pred_region
      %93 = dma.done [#allocation11], 256
    $region53: #{tpu_custom_call.1} parent=1 // pred_fallthru
      _
    %v95 = vld [vmem:[#allocation4] sm:$0xff]
    %v96 = vld [vmem:[#allocation4 + $0x8] sm:$0xff]
    %vm97 = vcmask 261120
    %v98 = vsel %vm97, %v95, 0.0
    %99 = vadd.xlane.f32.xlu0 %v98
    %v100 = vpop.xlane.xlu0 %99
    %v101 = vsel %vm97, %v96, 0.0
    %102 = vadd.xlane.f32.xlu0 %v101
    %v103 = vpop.xlane.xlu0 %102
    %v104 = vrcp.pop 32.0
    %v105 = vmul.f32 %v100, %v104
    %v106 = vmul.f32 %v103, %v104
    %v107 = vsub.f32 %v95, %v105
    %v108 = vsub.f32 %v96, %v106
    %v109 = vmul.f32 %v107, %v107
    %v110 = vmul.f32 %v108, %v108
    %v111 = vsel %vm97, %v109, 0.0
    %112 = vadd.xlane.f32.xlu0 %v111
    %v113 = vpop.xlane.xlu0 %112
    %v114 = vsel %vm97, %v110, 0.0
    %115 = vadd.xlane.f32.xlu0 %v114
    %v116 = vpop.xlane.xlu0 %115
    %v117 = vmul.f32 %v113, 0.032258064
    %v118 = vmul.f32 %v116, 0.032258064
    %v119 = vrsqrt.pop %v117
    %v120 = vmul.f32 %v117, %v119
    %vm121 = vcmp.eq.f32.partialorder %v117, inf
    %v122 = vsel %vm121, %v117, %v120
    %vm123 = vcmp.eq.f32.partialorder %v117, 0.0
    %v124 = vand.u32 %v117, 2147483648
    %v125 = vsel %vm123, %v124, %v122
    %v126 = vrsqrt.pop %v118
    %v127 = vmul.f32 %v118, %v126
    %vm128 = vcmp.eq.f32.partialorder %v118, inf
    %v129 = vsel %vm128, %v118, %v127
    %vm130 = vcmp.eq.f32.partialorder %v118, 0.0
    %v131 = vand.u32 %v118, 2147483648
    %v132 = vsel %vm130, %v131, %v129
    %v133 = vadd.f32 %v125, 1e-05
    %v134 = vadd.f32 %v132, 1e-05
    %v135 = vrcp.pop %v133
    %v136 = vrcp.pop %v134
    %s137 = sld [smem:[#allocation2]]
    %v138 = vstv %s137
    %v139 = vmul.f32 %v138, %v107
    %v140 = vmul.f32 %v138, %v108
    %v141 = vmul.f32 %v139, %v135
    %v142 = vmul.f32 %v140, %v136
    %s143 = sld [smem:[#allocation3]]
    %v144 = vstv %s143
    %v145 = vadd.f32 %v141, %v144
    %v146 = vadd.f32 %v142, %v144
    %v147 = vpack.c.bf16 %v146, %v145
    %v148 = vld [vmem:[#allocation7] sm:$0xf]
    %v149 = vld [vmem:[#allocation7 + $0x4] sm:$0xf]
    %v150 = vld [vmem:[#allocation7 + $0x8] sm:$0xf]
    %v151 = vld [vmem:[#allocation7 + $0xc] sm:$0xf]
    %v152 = vld [vmem:[%s6] sm:$0x1]
    %v154 = vlaneseq
    %v155 = vshrl.u32 %v154, 7
    %v156 = vsub.s32 0, %v155
    %v157 = vrot.slane %v152, %v156
    %v163 = vunpack.c.l.b16 %v148
    %v164 = vunpack.c.l.b16 %v149
    %v165 = vunpack.c.l.b16 %v150
    %v166 = vunpack.c.l.b16 %v151
    %v167 = vpack.c.b16 %v164, %v163
    %v168 = vpack.c.b16 %v166, %v165
    %v172 = vsel %vm97, %v147, 0
    %174 = vmatprep.subr.bf16.mxu0 0
    %175 = vmatpush1.bf16.msra.mxu0 0
    %176 = vmatprep.subr.bf16.mxu0 0
    %177 = vmatpush1.bf16.msra.mxu0 0
    %178 = vmatprep.subr.bf16.mxu0 0
    %179 = vmatpush1.bf16.msra.mxu0 0
    %180 = vmatprep.subr.bf16.mxu0 0
    %181 = vmatpush1.bf16.msra.mxu0 0
    %182 = vmatprep.subr.bf16.mxu0 0
    %183 = vmatpush1.bf16.msra.mxu0 0
    %184 = vmatprep.subr.bf16.mxu0 0
    %185 = vmatpush1.bf16.msra.mxu0 0
    %186 = vmatprep.subr.bf16.mxu0 0
    %187 = vmatpush1.bf16.msra.mxu0 %v168
    %188 = vmatprep.subr.bf16.mxu0 0
    %189 = vmatpush1.bf16.msra.mxu0 %v167
    %190 = vmatprep.subr.bf16.mxu0 0
    %191 = vmatpush2.bf16.msra.mxu0 0
    %192 = vmatprep.subr.bf16.mxu0 0
    %193 = vmatpush2.bf16.msra.mxu0 0
    %194 = vmatprep.subr.bf16.mxu0 0
    %195 = vmatpush2.bf16.msra.mxu0 0
    %196 = vmatprep.subr.bf16.mxu0 0
    %197 = vmatpush2.bf16.msra.mxu0 0
    %198 = vmatprep.subr.bf16.mxu0 0
    %199 = vmatpush2.bf16.msra.mxu0 0
    %200 = vmatprep.subr.bf16.mxu0 0
    %201 = vmatpush2.bf16.msra.mxu0 0
    %202 = vmatprep.subr.bf16.mxu0 0
    %203 = vmatpush2.bf16.msra.mxu0 0
    %204 = vmatprep.subr.bf16.mxu0 0
    %205 = vmatpush2.bf16.msra.mxu0 0
    %206 = vmatprep.mubr.bf16.mxu0 0
    %207 = vmatmul.mubr.bf16.gmra.mxu0 %v172
    %v208 = vpop.f32.mrf.mxu0
    %v209 = vadd.f32 %v157, %v208
    %v210 = vpop.f32.mrf.mxu0
    %v211 = vpop.f32.mrf.mxu0
    %v212 = vadd.f32 %v157, %v211
    %v213 = vpop.f32.mrf.mxu0
    %214 = vdwg.mxu0
    %v215 = vpack.c.bf16 %v212, %v209
    %v217 = vunpack.c.l.b16 %v215
    %v218 = vunpack.c.h.b16 %v215
    %v219 = vpack.c.b16 %v217, %v217
    %v220 = vpack.c.b16 %v218, %v218
    %vm223 = vcmask 257024
    %224 = vst.msk [vmem:[#allocation12] sm:$0xf] %vm223, %v219
    %225 = vst.msk [vmem:[#allocation12 + $0x4] sm:$0xf] %vm223, %v220
    %v226 = vld [vmem:[#allocation9] sm:$0xf]
    %v227 = vld [vmem:[#allocation9 + $0x4] sm:$0xf]
    %v228 = vld [vmem:[#allocation9 + $0x8] sm:$0xf]
    %v229 = vld [vmem:[#allocation9 + $0xc] sm:$0xf]
    %v230 = vld [vmem:[%s7] sm:$0x1]
    %v232 = vlaneseq
    %v233 = vshrl.u32 %v232, 7
    %v234 = vsub.s32 0, %v233
    %v235 = vrot.slane %v230, %v234
    %v241 = vunpack.c.l.b16 %v226
    %v242 = vunpack.c.l.b16 %v227
    %v243 = vunpack.c.l.b16 %v228
    %v244 = vunpack.c.l.b16 %v229
    %v245 = vpack.c.b16 %v242, %v241
    %v246 = vpack.c.b16 %v244, %v243
    %249 = vmatprep.subr.bf16.mxu0 0
    %250 = vmatpush1.bf16.msra.mxu0 0
    %251 = vmatprep.subr.bf16.mxu0 0
    %252 = vmatpush1.bf16.msra.mxu0 0
    %253 = vmatprep.subr.bf16.mxu0 0
    %254 = vmatpush1.bf16.msra.mxu0 0
    %255 = vmatprep.subr.bf16.mxu0 0
    %256 = vmatpush1.bf16.msra.mxu0 0
    %257 = vmatprep.subr.bf16.mxu0 0
    %258 = vmatpush1.bf16.msra.mxu0 0
    %259 = vmatprep.subr.bf16.mxu0 0
    %260 = vmatpush1.bf16.msra.mxu0 0
    %261 = vmatprep.subr.bf16.mxu0 0
    %262 = vmatpush1.bf16.msra.mxu0 %v246
    %263 = vmatprep.subr.bf16.mxu0 0
    %264 = vmatpush1.bf16.msra.mxu0 %v245
    %265 = vmatprep.subr.bf16.mxu0 0
    %266 = vmatpush2.bf16.msra.mxu0 0
    %267 = vmatprep.subr.bf16.mxu0 0
    %268 = vmatpush2.bf16.msra.mxu0 0
    %269 = vmatprep.subr.bf16.mxu0 0
    %270 = vmatpush2.bf16.msra.mxu0 0
    %271 = vmatprep.subr.bf16.mxu0 0
    %272 = vmatpush2.bf16.msra.mxu0 0
    %273 = vmatprep.subr.bf16.mxu0 0
    %274 = vmatpush2.bf16.msra.mxu0 0
    %275 = vmatprep.subr.bf16.mxu0 0
    %276 = vmatpush2.bf16.msra.mxu0 0
    %277 = vmatprep.subr.bf16.mxu0 0
    %278 = vmatpush2.bf16.msra.mxu0 0
    %279 = vmatprep.subr.bf16.mxu0 0
    %280 = vmatpush2.bf16.msra.mxu0 0
    %281 = vmatprep.mubr.bf16.mxu0 0
    %282 = vmatmul.mubr.bf16.gmra.mxu0 %v172
    %v283 = vpop.f32.mrf.mxu0
    %v284 = vadd.f32 %v235, %v283
    %v285 = vpop.f32.mrf.mxu0
    %v286 = vpop.f32.mrf.mxu0
    %v287 = vadd.f32 %v235, %v286
    %v288 = vpop.f32.mrf.mxu0
    %289 = vdwg.mxu0
    %v290 = vpack.c.bf16 %v287, %v284
    %v292 = vunpack.c.l.b16 %v290
    %v293 = vunpack.c.h.b16 %v290
    %v294 = vpack.c.b16 %v292, %v292
    %v295 = vpack.c.b16 %v293, %v293
    %298 = vst.msk [vmem:[#allocation13] sm:$0xf] %vm223, %v294
    %299 = vst.msk [vmem:[#allocation13 + $0x4] sm:$0xf] %vm223, %v295
    %v300 = vld [vmem:[#allocation10] sm:$0xf]
    %v301 = vld [vmem:[#allocation10 + $0x4] sm:$0xf]
    %v302 = vld [vmem:[#allocation10 + $0x8] sm:$0xf]
    %v303 = vld [vmem:[#allocation10 + $0xc] sm:$0xf]
    %v304 = vld [vmem:[%s8] sm:$0x1]
    %v306 = vlaneseq
    %v307 = vshrl.u32 %v306, 7
    %v308 = vsub.s32 0, %v307
    %v309 = vrot.slane %v304, %v308
    %v315 = vunpack.c.l.b16 %v300
    %v316 = vunpack.c.l.b16 %v301
    %v317 = vunpack.c.l.b16 %v302
    %v318 = vunpack.c.l.b16 %v303
    %v319 = vpack.c.b16 %v316, %v315
    %v320 = vpack.c.b16 %v318, %v317
    %323 = vmatprep.subr.bf16.mxu0 0
    %324 = vmatpush1.bf16.msra.mxu0 0
    %325 = vmatprep.subr.bf16.mxu0 0
    %326 = vmatpush1.bf16.msra.mxu0 0
    %327 = vmatprep.subr.bf16.mxu0 0
    %328 = vmatpush1.bf16.msra.mxu0 0
    %329 = vmatprep.subr.bf16.mxu0 0
    %330 = vmatpush1.bf16.msra.mxu0 0
    %331 = vmatprep.subr.bf16.mxu0 0
    %332 = vmatpush1.bf16.msra.mxu0 0
    %333 = vmatprep.subr.bf16.mxu0 0
    %334 = vmatpush1.bf16.msra.mxu0 0
    %335 = vmatprep.subr.bf16.mxu0 0
    %336 = vmatpush1.bf16.msra.mxu0 %v320
    %337 = vmatprep.subr.bf16.mxu0 0
    %338 = vmatpush1.bf16.msra.mxu0 %v319
    %339 = vmatprep.subr.bf16.mxu0 0
    %340 = vmatpush2.bf16.msra.mxu0 0
    %341 = vmatprep.subr.bf16.mxu0 0
    %342 = vmatpush2.bf16.msra.mxu0 0
    %343 = vmatprep.subr.bf16.mxu0 0
    %344 = vmatpush2.bf16.msra.mxu0 0
    %345 = vmatprep.subr.bf16.mxu0 0
    %346 = vmatpush2.bf16.msra.mxu0 0
    %347 = vmatprep.subr.bf16.mxu0 0
    %348 = vmatpush2.bf16.msra.mxu0 0
    %349 = vmatprep.subr.bf16.mxu0 0
    %350 = vmatpush2.bf16.msra.mxu0 0
    %351 = vmatprep.subr.bf16.mxu0 0
    %352 = vmatpush2.bf16.msra.mxu0 0
    %353 = vmatprep.subr.bf16.mxu0 0
    %354 = vmatpush2.bf16.msra.mxu0 0
    %355 = vmatprep.mubr.bf16.mxu0 0
    %356 = vmatmul.mubr.bf16.gmra.mxu0 %v172
    %v357 = vpop.f32.mrf.mxu0
    %v358 = vadd.f32 %v309, %v357
    %v359 = vpop.f32.mrf.mxu0
    %v360 = vpop.f32.mrf.mxu0
    %v361 = vadd.f32 %v309, %v360
    %v362 = vpop.f32.mrf.mxu0
    %363 = vdwg.mxu0
    %v364 = vpack.c.bf16 %v361, %v358
    %v366 = vunpack.c.l.b16 %v364
    %v367 = vunpack.c.h.b16 %v364
    %v368 = vpack.c.b16 %v366, %v366
    %v369 = vpack.c.b16 %v367, %v367
    %372 = vst.msk [vmem:[#allocation15] sm:$0xf] %vm223, %v368
    %373 = vst.msk [vmem:[#allocation15 + $0x4] sm:$0xf] %vm223, %v369
    // Predicated region
    $region54: #{tpu_custom_call.1} parent=1 // pred_check
      _
    $region55: #{tpu_custom_call.1} parent=1 // pred_check_branch
      %375 = sbr.rel (0) target = $region57
    $region56: #{tpu_custom_call.1} parent=1 // pred_region
      %s377 = ssub.s32 128, 128
      %378 = vsyncadd [#allocation6], %s377
      %s379 = sshll.u32 [#allocation12], 4
      %s380 = int_to_ptr.vmem [resolvable:$true] %s379
      %385 = dma.vmem_to_hbm [thread:$0]  %s380, 128, %s9, [#allocation6], 64, 64, 4
    $region57: #{tpu_custom_call.1} parent=1 // pred_fallthru
      _
    // Predicated region
    $region58: #{tpu_custom_call.1} parent=1 // pred_check
      _
    $region59: #{tpu_custom_call.1} parent=1 // pred_check_branch
      %387 = sbr.rel (0) target = $region61
    $region60: #{tpu_custom_call.1} parent=1 // pred_region
      %s389 = ssub.s32 128, 128
      %390 = vsyncadd [#allocation14], %s389
      %s391 = sshll.u32 [#allocation13], 4
      %s392 = int_to_ptr.vmem [resolvable:$true] %s391
      %397 = dma.vmem_to_hbm [thread:$0]  %s392, 128, %s10, [#allocation14], 64, 64, 4
    $region61: #{tpu_custom_call.1} parent=1 // pred_fallthru
      _
    // Predicated region
    $region62: #{tpu_custom_call.1} parent=1 // pred_check
      _
    $region63: #{tpu_custom_call.1} parent=1 // pred_check_branch
      %399 = sbr.rel (0) target = $region65
    $region64: #{tpu_custom_call.1} parent=1 // pred_region
      %s401 = ssub.s32 128, 128
      %402 = vsyncadd [#allocation14], %s401
      %s403 = sshll.u32 [#allocation15], 4
      %s404 = int_to_ptr.vmem [resolvable:$true] %s403
      %409 = dma.vmem_to_hbm [thread:$0]  %s404, 128, %s11, [#allocation14], 64, 64, 4
    $region65: #{tpu_custom_call.1} parent=1 // pred_fallthru
      _
    // Predicated region
    $region66: #{tpu_custom_call.1} parent=1 // pred_check
      _
    $region67: #{tpu_custom_call.1} parent=1 // pred_check_branch
      %411 = sbr.rel (0) target = $region69
    $region68: #{tpu_custom_call.1} parent=1 // pred_region
      %412 = dma.done [#allocation6], 128
    $region69: #{tpu_custom_call.1} parent=1 // pred_fallthru
      _
    // Predicated region
    $region70: #{tpu_custom_call.1} parent=1 // pred_check
      _
    $region71: #{tpu_custom_call.1} parent=1 // pred_check_branch
      %414 = sbr.rel (0) target = $region73
    $region72: #{tpu_custom_call.1} parent=1 // pred_region
      %415 = dma.done [#allocation14], 128
    $region73: #{tpu_custom_call.1} parent=1 // pred_fallthru
      _
    // Predicated region
    $region74: #{tpu_custom_call.1} parent=1 // pred_check
      _
    $region75: #{tpu_custom_call.1} parent=1 // pred_check_branch
      %417 = sbr.rel (0) target = $region77
    $region76: #{tpu_custom_call.1} parent=1 // pred_region
      %418 = dma.done [#allocation14], 128
    $region77: #{tpu_custom_call.1} parent=1 // pred_fallthru
      _
    %419 = vsyncpa [#allocation5], 1
    %420 = vsyncpa [#allocation8], 1
    %421 = vsyncpa [#allocation11], 1
    %422 = vsyncpa [#allocation6], 1
    %423 = vsyncpa [#allocation14], 1

</llo_original>
